<compile_context>
chip_gen: v7x
topology: tpu7x:2x2x1
jax: 0.10.0
libtpu: 0.0.40
codegen_flags: <defaults>
</compile_context>

<pallas_src>
import functools

import jax
import jax.numpy as jnp
from jax.experimental import pallas as pl
from jax.experimental.pallas import tpu as pltpu

PACK = 8  # batch rows folded into the lane dimension


# ---------------------------------------------------------------------------
# Fused kernel: whole MLP in one body.
#   refs = (x_ref, w1_ref, b1_ref, w2_ref, b2_ref, ..., o_ref)
# ---------------------------------------------------------------------------
def _fused_mlp_kernel(*refs, num_layers):
    x_ref = refs[0]
    o_ref = refs[1 + 2 * num_layers]

    h = x_ref[...]
    for layer in range(num_layers):
        w_ref = refs[1 + 2 * layer]   # (pack*Cin_l, pack*Cout_l), block-diagonal
        b_ref = refs[2 + 2 * layer]   # (1, pack*Cout_l)
        # Single cast into the MXU input dtype; f32 accumulation on the MXU.
        h = jnp.dot(h.astype(w_ref.dtype), w_ref[...],
                    preferred_element_type=jnp.float32)
        # Bias + ReLU epilogue on the VPU (norm='none', dropout=0.0 are identity).
        h = jnp.maximum(h + b_ref[...].astype(jnp.float32), 0.0)
    o_ref[...] = h.astype(o_ref.dtype)


# ---------------------------------------------------------------------------
# Wrapper: single fused pallas_call for the whole MLP on lane-packed data.
#   - single-tile batches : gridless, whole arrays pinned in VMEM.
#   - larger batches      : tile only the (packed) batch dim; weights/biases
#                           stay resident in VMEM across grid steps.
# ---------------------------------------------------------------------------
def mlp_forward(x, packed_params, *, block_rows=8192):
    """x: (N, in_channels) -> (N, hidden_layers[-1]).

    packed_params: list of (W_blockdiag, b_tiled) from pack_mlp_params().
    block_rows: batch rows per grid step on the tiled path (multiple of PACK*8).
    """
    N, Cin = x.shape
    num_layers = len(packed_params)
    cin_p = packed_params[0][0].shape[0]
    cout_p = packed_params[-1][0].shape[1]
    pack = cin_p // Cin
    Cout = cout_p // pack

    # Pad the batch to a multiple of `pack`. Padded rows compute garbage that is
    # sliced away at the end; nothing reduces across rows so this is safe.
    pad = (-N) % pack
    if pad:
        x = jnp.concatenate([x, jnp.zeros((pad, Cin), x.dtype)], axis=0)
    Rp = (N + pad) // pack
    x_packed = x.reshape(Rp, pack * Cin)   # row-major: identical bytes, free

    kernel = functools.partial(_fused_mlp_kernel, num_layers=num_layers)
    flat_inputs = [x_packed]
    for w_p, b_p in packed_params:
        flat_inputs.extend([w_p, b_p])

    # Packed rows per grid step (multiple of 8 -> satisfies the sublane rule).
    tn = max(8, (block_rows // pack) // 8 * 8)

    if Rp <= tn:
        # Gridless fast path: one invocation, no pipeline bookkeeping.
        out_packed = pl.pallas_call(
            kernel,
            out_shape=jax.ShapeDtypeStruct((Rp, pack * Cout), x.dtype),
            in_specs=[pl.BlockSpec(memory_space=pltpu.MemorySpace.VMEM)]
            * len(flat_inputs),
            out_specs=pl.BlockSpec(memory_space=pltpu.MemorySpace.VMEM),
        )(*flat_inputs)
    else:
        # Tiled path: tile only the packed batch dim. Weights/biases use a
        # constant index_map -> DMA'd once, resident across grid steps.
        steps = pl.cdiv(Rp, tn)                       # >= 2 here by construction
        # Rebalance so the steps are roughly equal (v7x: both TCs get real work).
        tn = min(tn, ((pl.cdiv(Rp, steps) + 7) // 8) * 8)
        grid = (pl.cdiv(Rp, tn),)

        in_specs = [pl.BlockSpec((tn, pack * Cin), lambda i: (i, 0))]
        for w_p, b_p in packed_params:
            ci, co = w_p.shape
            in_specs.append(pl.BlockSpec((ci, co), lambda i: (0, 0)))
            in_specs.append(pl.BlockSpec((1, co), lambda i: (0, 0)))

        # Raise scoped VMEM only if the double-buffered footprint could exceed
        # v5e's 16 MiB default (v6e/v7x defaults are 32 MiB).
        x_bytes = tn * pack * Cin * x.dtype.itemsize
        o_bytes = tn * pack * Cout * x.dtype.itemsize
        w_bytes = sum(w.size * w.dtype.itemsize + b.size * b.dtype.itemsize
                      for w, b in packed_params)
        est = 2 * (x_bytes + o_bytes) + 2 * w_bytes + (2 << 20)
        cp_kwargs = dict(dimension_semantics=("parallel",))
        if est > (16 << 20):
            cp_kwargs["vmem_limit_bytes"] = min(2 * est, 64 << 20)

        # TODO(synk): if profiling at very large tiles still shows exposed x DMA,
        # add pipeline_mode=pl.Buffered(3) on the x BlockSpec.
        out_packed = pl.pallas_call(
            kernel,
            out_shape=jax.ShapeDtypeStruct((Rp, pack * Cout), x.dtype),
            grid=grid,
            in_specs=in_specs,
            out_specs=pl.BlockSpec((tn, pack * Cout), lambda i: (i, 0)),
            compiler_params=pltpu.CompilerParams(**cp_kwargs),
        )(*flat_inputs)

    out = out_packed.reshape(Rp * pack, Cout)
    return out[:N] if pad else out


# ---------------------------------------------------------------------------
# Parameters: PyTorch nn.Linear default init U(-1/sqrt(fan_in), 1/sqrt(fan_in)),
# weights stored pre-transposed as (in, out), biases as (1, out).
# ---------------------------------------------------------------------------
def init_mlp_params(key, in_channels, hidden_layers, dtype=jnp.float32):
    params = []
    prev = in_channels
    for ch in hidden_layers:
        key, kw, kb = jax.random.split(key, 3)
        bound = 1.0 / (prev ** 0.5)
        w_t = jax.random.uniform(kw, (prev, ch), dtype, -bound, bound)  # (in, out)
        b = jax.random.uniform(kb, (1, ch), dtype, -bound, bound)
        params.append((w_t, b))
        prev = ch
    return params


def pack_mlp_params(params, *, pack=PACK, weight_dtype=None):
    """Lane-pack: block-diagonal weights + tiled biases (done once at init)."""
    packed = []
    for w_t, b in params:
        eye = jnp.eye(pack, dtype=w_t.dtype)
        w_p = jnp.kron(eye, w_t)        # (pack*Cin, pack*Cout), block-diagonal
        b_p = jnp.tile(b, (1, pack))    # (1, pack*Cout)
        if weight_dtype is not None:    # e.g. bf16 for v6e/v7x MXU-native matmuls
            w_p = w_p.astype(weight_dtype)
        packed.append((w_p, b_p))
    return packed


# Pure-JAX reference (un-packed, f32) for correctness checking.
def mlp_ref(x, params):
    h = x
    for w_t, b in params:
        h = jnp.maximum(jnp.dot(h, w_t) + b, 0.0)
    return h


if __name__ == "__main__":
    IN_CHANNELS = 16
    HIDDEN = [32, 32]

    key = jax.random.PRNGKey(0)
    key, kp = jax.random.split(key)
    params = init_mlp_params(kp, IN_CHANNELS, HIDDEN)                 # f32 reference params
    packed_f32 = pack_mlp_params(params)                              # lane-packed f32
    packed_bf16 = pack_mlp_params(params, weight_dtype=jnp.bfloat16)  # MXU-native variant

    # --- small batch: gridless, fully fused, lane-packed path ---
    key, kx = jax.random.split(key)
    x = jax.random.normal(kx, (8, IN_CHANNELS), jnp.float32)
    out = jax.block_until_ready(mlp_forward(x, packed_f32))
    assert out.shape == (8, HIDDEN[-1])
    assert jnp.allclose(out, mlp_ref(x, params), atol=1e-5, rtol=1e-4), "small-batch mismatch"

    # --- batch not a multiple of the pack factor (padding path) ---
    key, kx = jax.random.split(key)
    x13 = jax.random.normal(kx, (13, IN_CHANNELS), jnp.float32)
    out13 = jax.block_until_ready(mlp_forward(x13, packed_f32))
    assert out13.shape == (13, HIDDEN[-1])
    assert jnp.allclose(out13, mlp_ref(x13, params), atol=1e-5, rtol=1e-4), "padding mismatch"

    # --- tiled path: small block_rows to force a multi-step (>=2) grid ---
    key, kx = jax.random.split(key)
    x_big = jax.random.normal(kx, (256, IN_CHANNELS), jnp.float32)
    out_big = jax.block_until_ready(mlp_forward(x_big, packed_f32, block_rows=64))
    assert out_big.shape == (256, HIDDEN[-1])
    assert jnp.allclose(out_big, mlp_ref(x_big, params), atol=1e-5, rtol=1e-4), "tiled mismatch"

    # --- bf16 packed weights (halves MXU work / weight traffic; f32 accumulate) ---
    out_bf16 = jax.block_until_ready(mlp_forward(x_big, packed_bf16, block_rows=64))
    assert jnp.allclose(out_bf16, mlp_ref(x_big, params), atol=5e-2, rtol=5e-2), "bf16 mismatch"

    print("KERNEL_OK")
</pallas_src>

<mosaic_0001>
module attributes {stable_mosaic.version = 11 : i64} {
  func.func @_fused_mlp_kernel(%arg0: memref<1x128xf32, #tpu.memory_space<vmem>>, %arg1: memref<128x256xf32, #tpu.memory_space<vmem>>, %arg2: memref<1x256xf32, #tpu.memory_space<vmem>>, %arg3: memref<256x256xf32, #tpu.memory_space<vmem>>, %arg4: memref<1x256xf32, #tpu.memory_space<vmem>>, %arg5: memref<1x256xf32, #tpu.memory_space<vmem>>) attributes {dimension_semantics = [], scalar_prefetch = 0 : i64, scratch_operands = 0 : i64, tpu.core_type = #tpu.core_type<tc>} {
    %c0 = arith.constant 0 : index
    %c0_0 = arith.constant 0 : index
    %0 = vector.load %arg0[%c0, %c0_0] : memref<1x128xf32, #tpu.memory_space<vmem>>, vector<1x128xf32>
    %c0_1 = arith.constant 0 : index
    %c0_2 = arith.constant 0 : index
    %1 = vector.load %arg1[%c0_1, %c0_2] : memref<128x256xf32, #tpu.memory_space<vmem>>, vector<128x256xf32>
    %cst = arith.constant dense<0.000000e+00> : vector<1x256xf32>
    %2 = tpu.matmul %0, %1, %cst {dimension_numbers = #tpu.dot_dimension_numbers<[1], [0], [0], [1], [0, 0, 1, 1], [], []>} : vector<1x128xf32>, vector<128x256xf32>, vector<1x256xf32> -> vector<1x256xf32>
    %c0_3 = arith.constant 0 : index
    %c0_4 = arith.constant 0 : index
    %3 = vector.load %arg2[%c0_3, %c0_4] : memref<1x256xf32, #tpu.memory_space<vmem>>, vector<1x256xf32>
    %4 = arith.addf %2, %3 : vector<1x256xf32>
    %cst_5 = arith.constant 0.000000e+00 : f32
    %5 = vector.broadcast %cst_5 : f32 to vector<1x256xf32>
    %6 = arith.maximumf %4, %5 : vector<1x256xf32>
    %c0_6 = arith.constant 0 : index
    %c0_7 = arith.constant 0 : index
    %7 = vector.load %arg3[%c0_6, %c0_7] : memref<256x256xf32, #tpu.memory_space<vmem>>, vector<256x256xf32>
    %cst_8 = arith.constant dense<0.000000e+00> : vector<1x256xf32>
    %8 = tpu.matmul %6, %7, %cst_8 {dimension_numbers = #tpu.dot_dimension_numbers<[1], [0], [0], [1], [0, 0, 1, 1], [], []>} : vector<1x256xf32>, vector<256x256xf32>, vector<1x256xf32> -> vector<1x256xf32>
    %c0_9 = arith.constant 0 : index
    %c0_10 = arith.constant 0 : index
    %9 = vector.load %arg4[%c0_9, %c0_10] : memref<1x256xf32, #tpu.memory_space<vmem>>, vector<1x256xf32>
    %10 = arith.addf %8, %9 : vector<1x256xf32>
    %cst_11 = arith.constant 0.000000e+00 : f32
    %11 = vector.broadcast %cst_11 : f32 to vector<1x256xf32>
    %12 = arith.maximumf %10, %11 : vector<1x256xf32>
    %c0_12 = arith.constant 0 : index
    %c0_13 = arith.constant 0 : index
    %13 = vector.load %arg5[%c0_12, %c0_13] : memref<1x256xf32, #tpu.memory_space<vmem>>, vector<1x256xf32>
    tpu.vector_store %arg5[%c0_12, %c0_13], %12 {strides = array<i32>} : memref<1x256xf32, #tpu.memory_space<vmem>>, vector<1x256xf32>,
    return
  }
}

</mosaic_0001>

<llo_original>
// kernel: tpu_custom_call.1
$region0: #{tpu_custom_call.1}
  #allocation0 [shape = 'u32[]', space=smem, size = 0x4, offset = 0x4, fixed_abs, tag = 'smem constant byte address 0x4 - core index']
  #allocation1 [shape = 'u32[144,128]{1,0:T(1,128)}', space=vmem, size = 0x12000, scoped, tag = 'internal scratch']
  %s0 = inlined_call_operand.hbm [shape: f32[1,128], index: 0, kind: input, shape index: {}]
  %s1 = inlined_call_operand.hbm [shape: f32[128,256], index: 1, kind: input, shape index: {}]
  %s2 = inlined_call_operand.vmem [shape: f32[1,256], index: 2, kind: input, shape index: {}]
  %s3 = inlined_call_operand.hbm [shape: f32[256,256], index: 3, kind: input, shape index: {}]
  %s4 = inlined_call_operand.vmem [shape: f32[1,256], index: 4, kind: input, shape index: {}]
  %s5 = inlined_call_operand.hbm [shape: f32[1,256], index: 5, kind: output, shape index: {}]
  %s6 = sld [smem:[#allocation0]]
  $region42: #{tpu_custom_call.1} parent=0
    _
  %s8 = ssub.s32 1, %s6
  %s9 = scalar_select 0, %s8, %s6
  $region1: #{tpu_custom_call.1} parent=0
    #allocation2 [shape = 'u8[512]{0}', space=vmem, size = 0x400, scoped, tag = 'input window, operand 0, single buffered']
    #allocation3 [shape = 's32[1]{0}', space=sflag, size = 0x4, scoped, tag = 'scoped memory for tpu_custom_call.1']
    #allocation4 [shape = 's32[1]{0}', space=sflag, size = 0x4, scoped, tag = 'scoped memory for tpu_custom_call.1']
    #allocation5 [shape = 'u8[131072]{0}', space=vmem, size = 0x20000, scoped, tag = 'input window, operand 1, single buffered']
    #allocation6 [shape = 's32[1]{0}', space=sflag, size = 0x4, scoped, tag = 'scoped memory for tpu_custom_call.1']
    #allocation7 [shape = 'u8[262144]{0}', space=vmem, size = 0x40000, scoped, tag = 'input window, operand 3, single buffered']
    #allocation8 [shape = 'u8[1024]{0}', space=vmem, size = 0x400, scoped, tag = 'output window, operand 0, single buffered']
    %10 = vsyncpa [#allocation3], 0
    %11 = vsyncpa [#allocation6], 0
    %12 = vsyncpa [#allocation4], 0
    // Predicated region
    $region2: #{tpu_custom_call.1} parent=1 // pred_check
      _
    $region3: #{tpu_custom_call.1} parent=1 // pred_check_branch
      %14 = sbr.rel (0) target = $region5
    $region4: #{tpu_custom_call.1} parent=1 // pred_region
      %s16 = ssub.s32 16, 16
      %17 = vsyncadd [#allocation3], %s16
      %s19 = sshll.u32 [#allocation2], 4
      %s20 = int_to_ptr.vmem [resolvable:$true] %s19
      %22 = dma.hbm_to_vmem [thread:$0]  %s0, 16, %s20, [#allocation3]
    $region5: #{tpu_custom_call.1} parent=1 // pred_fallthru
      _
    // Predicated region
    $region6: #{tpu_custom_call.1} parent=1 // pred_check
      _
    $region7: #{tpu_custom_call.1} parent=1 // pred_check_branch
      %24 = sbr.rel (0) target = $region9
    $region8: #{tpu_custom_call.1} parent=1 // pred_region
      %s26 = ssub.s32 4096, 4096
      %27 = vsyncadd [#allocation6], %s26
      %s28 = sshll.u32 [#allocation5], 4
      %s29 = int_to_ptr.vmem [resolvable:$true] %s28
      %34 = dma.hbm_to_vmem [thread:$0]  %s1, 4096, %s29, [#allocation6], 256, 256, 16
    $region9: #{tpu_custom_call.1} parent=1 // pred_fallthru
      _
    // Predicated region
    $region10: #{tpu_custom_call.1} parent=1 // pred_check
      _
    $region11: #{tpu_custom_call.1} parent=1 // pred_check_branch
      %36 = sbr.rel (0) target = $region13
    $region12: #{tpu_custom_call.1} parent=1 // pred_region
      _
    $region13: #{tpu_custom_call.1} parent=1 // pred_fallthru
      _
    // Predicated region
    $region14: #{tpu_custom_call.1} parent=1 // pred_check
      _
    $region15: #{tpu_custom_call.1} parent=1 // pred_check_branch
      %38 = sbr.rel (0) target = $region17
    $region16: #{tpu_custom_call.1} parent=1 // pred_region
      %s40 = ssub.s32 8192, 8192
      %41 = vsyncadd [#allocation6], %s40
      %s42 = sshll.u32 [#allocation7], 4
      %s43 = int_to_ptr.vmem [resolvable:$true] %s42
      %48 = dma.hbm_to_vmem [thread:$0]  %s3, 8192, %s43, [#allocation6], 256, 256, 16
    $region17: #{tpu_custom_call.1} parent=1 // pred_fallthru
      _
    // Predicated region
    $region18: #{tpu_custom_call.1} parent=1 // pred_check
      _
    $region19: #{tpu_custom_call.1} parent=1 // pred_check_branch
      %50 = sbr.rel (0) target = $region21
    $region20: #{tpu_custom_call.1} parent=1 // pred_region
      _
    $region21: #{tpu_custom_call.1} parent=1 // pred_fallthru
      _
    // Predicated region
    $region22: #{tpu_custom_call.1} parent=1 // pred_check
      _
    $region23: #{tpu_custom_call.1} parent=1 // pred_check_branch
      %52 = sbr.rel (0) target = $region25
    $region24: #{tpu_custom_call.1} parent=1 // pred_region
      %53 = dma.done [#allocation3], 16
    $region25: #{tpu_custom_call.1} parent=1 // pred_fallthru
      _
    // Predicated region
    $region26: #{tpu_custom_call.1} parent=1 // pred_check
      _
    $region27: #{tpu_custom_call.1} parent=1 // pred_check_branch
      %55 = sbr.rel (0) target = $region29
    $region28: #{tpu_custom_call.1} parent=1 // pred_region
      %56 = dma.done [#allocation6], 4096
    $region29: #{tpu_custom_call.1} parent=1 // pred_fallthru
      _
    // Predicated region
    $region30: #{tpu_custom_call.1} parent=1 // pred_check
      _
    $region31: #{tpu_custom_call.1} parent=1 // pred_check_branch
      %58 = sbr.rel (0) target = $region33
    $region32: #{tpu_custom_call.1} parent=1 // pred_region
      %59 = dma.done [#allocation6], 8192
    $region33: #{tpu_custom_call.1} parent=1 // pred_fallthru
      _
    %v60 = vld [vmem:[#allocation2] sm:$0x1]
    %v61 = vld [vmem:[#allocation5] sm:$0xff]
    %v62 = vld [vmem:[#allocation5 + $0x8] sm:$0xff]
    %v63 = vld [vmem:[#allocation5 + $0x10] sm:$0xff]
    %v64 = vld [vmem:[#allocation5 + $0x18] sm:$0xff]
    %v65 = vld [vmem:[#allocation5 + $0x20] sm:$0xff]
    %v66 = vld [vmem:[#allocation5 + $0x28] sm:$0xff]
    %v67 = vld [vmem:[#allocation5 + $0x30] sm:$0xff]
    %v68 = vld [vmem:[#allocation5 + $0x38] sm:$0xff]
    %v69 = vld [vmem:[#allocation5 + $0x40] sm:$0xff]
    %v70 = vld [vmem:[#allocation5 + $0x48] sm:$0xff]
    %v71 = vld [vmem:[#allocation5 + $0x50] sm:$0xff]
    %v72 = vld [vmem:[#allocation5 + $0x58] sm:$0xff]
    %v73 = vld [vmem:[#allocation5 + $0x60] sm:$0xff]
    %v74 = vld [vmem:[#allocation5 + $0x68] sm:$0xff]
    %v75 = vld [vmem:[#allocation5 + $0x70] sm:$0xff]
    %v76 = vld [vmem:[#allocation5 + $0x78] sm:$0xff]
    %v77 = vld [vmem:[#allocation5 + $0x80] sm:$0xff]
    %v78 = vld [vmem:[#allocation5 + $0x88] sm:$0xff]
    %v79 = vld [vmem:[#allocation5 + $0x90] sm:$0xff]
    %v80 = vld [vmem:[#allocation5 + $0x98] sm:$0xff]
    %v81 = vld [vmem:[#allocation5 + $0xa0] sm:$0xff]
    %v82 = vld [vmem:[#allocation5 + $0xa8] sm:$0xff]
    %v83 = vld [vmem:[#allocation5 + $0xb0] sm:$0xff]
    %v84 = vld [vmem:[#allocation5 + $0xb8] sm:$0xff]
    %v85 = vld [vmem:[#allocation5 + $0xc0] sm:$0xff]
    %v86 = vld [vmem:[#allocation5 + $0xc8] sm:$0xff]
    %v87 = vld [vmem:[#allocation5 + $0xd0] sm:$0xff]
    %v88 = vld [vmem:[#allocation5 + $0xd8] sm:$0xff]
    %v89 = vld [vmem:[#allocation5 + $0xe0] sm:$0xff]
    %v90 = vld [vmem:[#allocation5 + $0xe8] sm:$0xff]
    %v91 = vld [vmem:[#allocation5 + $0xf0] sm:$0xff]
    %v92 = vld [vmem:[#allocation5 + $0xf8] sm:$0xff]
    %v93 = vld [vmem:[%s2] sm:$0x3]
    %v95 = vlaneseq
    %v96 = vshrl.u32 %v95, 7
    %v97 = vsub.s32 0, %v96
    %v98 = vrot.slane %v93, %v97
    %v99 = vlaneseq
    %v100 = vshrl.u32 %v99, 7
    %v101 = vsub.s32 1, %v100
    %v102 = vrot.slane %v93, %v101
    %105 = vmatprep.subr.mxu0 %v62
    %106 = vmatpush1.msra.mxu0 %v61
    %107 = vmatprep.subr.mxu0 %v64
    %108 = vmatpush1.msra.mxu0 %v63
    %109 = vmatprep.subr.mxu0 %v66
    %110 = vmatpush1.msra.mxu0 %v65
    %111 = vmatprep.subr.mxu0 %v68
    %112 = vmatpush1.msra.mxu0 %v67
    %113 = vmatprep.subr.mxu0 %v70
    %114 = vmatpush1.msra.mxu0 %v69
    %115 = vmatprep.subr.mxu0 %v72
    %116 = vmatpush1.msra.mxu0 %v71
    %117 = vmatprep.subr.mxu0 %v74
    %118 = vmatpush1.msra.mxu0 %v73
    %119 = vmatprep.subr.mxu0 %v76
    %120 = vmatpush1.msra.mxu0 %v75
    %121 = vmatprep.subr.mxu0 %v78
    %122 = vmatpush1.msra.mxu0 %v77
    %123 = vmatprep.subr.mxu0 %v80
    %124 = vmatpush1.msra.mxu0 %v79
    %125 = vmatprep.subr.mxu0 %v82
    %126 = vmatpush1.msra.mxu0 %v81
    %127 = vmatprep.subr.mxu0 %v84
    %128 = vmatpush1.msra.mxu0 %v83
    %129 = vmatprep.subr.mxu0 %v86
    %130 = vmatpush1.msra.mxu0 %v85
    %131 = vmatprep.subr.mxu0 %v88
    %132 = vmatpush1.msra.mxu0 %v87
    %133 = vmatprep.subr.mxu0 %v90
    %134 = vmatpush1.msra.mxu0 %v89
    %135 = vmatprep.subr.mxu0 %v92
    %136 = vmatpush1.msra.mxu0 %v91
    %137 = vmatprep.subr.mxu0 0.0
    %138 = vmatpush1.msra.mxu0 0.0
    %139 = vmatprep.subr.mxu0 0.0
    %140 = vmatpush1.msra.mxu0 0.0
    %141 = vmatprep.subr.mxu0 0.0
    %142 = vmatpush1.msra.mxu0 0.0
    %143 = vmatprep.subr.mxu0 0.0
    %144 = vmatpush1.msra.mxu0 0.0
    %145 = vmatprep.subr.mxu0 0.0
    %146 = vmatpush1.msra.mxu0 0.0
    %147 = vmatprep.subr.mxu0 0.0
    %148 = vmatpush1.msra.mxu0 0.0
    %149 = vmatprep.subr.mxu0 0.0
    %150 = vmatpush1.msra.mxu0 0.0
    %151 = vmatprep.subr.mxu0 0.0
    %152 = vmatpush1.msra.mxu0 0.0
    %153 = vmatprep.subr.mxu0 0.0
    %154 = vmatpush1.msra.mxu0 0.0
    %155 = vmatprep.subr.mxu0 0.0
    %156 = vmatpush1.msra.mxu0 0.0
    %157 = vmatprep.subr.mxu0 0.0
    %158 = vmatpush1.msra.mxu0 0.0
    %159 = vmatprep.subr.mxu0 0.0
    %160 = vmatpush1.msra.mxu0 0.0
    %161 = vmatprep.subr.mxu0 0.0
    %162 = vmatpush1.msra.mxu0 0.0
    %163 = vmatprep.subr.mxu0 0.0
    %164 = vmatpush1.msra.mxu0 0.0
    %165 = vmatprep.subr.mxu0 0.0
    %166 = vmatpush1.msra.mxu0 0.0
    %167 = vmatprep.subr.mxu0 0.0
    %168 = vmatpush1.msra.mxu0 0.0
    %169 = vmatprep.mubr.f32.mxu0 0.0
    %170 = vmatmul.mubr.f32.gmra.mrb[0].mxu0 %v60
    %v171 = vpop.f32.mrb[0].mxu0
    %v172 = vadd.f32 %v98, %v171
    %v173 = vpop.f32.mrb[0].mxu0
    %v174 = vadd.f32 %v102, %v173
    %175 = vdwg.mxu0
    %v176 = vmax.f32 %v172, 0.0
    %v177 = vmax.f32 %v174, 0.0
    %v178 = vld [vmem:[#allocation7] sm:$0xff]
    %v179 = vld [vmem:[#allocation7 + $0x8] sm:$0xff]
    %v180 = vld [vmem:[#allocation7 + $0x10] sm:$0xff]
    %v181 = vld [vmem:[#allocation7 + $0x18] sm:$0xff]
    %v182 = vld [vmem:[#allocation7 + $0x20] sm:$0xff]
    %v183 = vld [vmem:[#allocation7 + $0x28] sm:$0xff]
    %v184 = vld [vmem:[#allocation7 + $0x30] sm:$0xff]
    %v185 = vld [vmem:[#allocation7 + $0x38] sm:$0xff]
    %v186 = vld [vmem:[#allocation7 + $0x40] sm:$0xff]
    %v187 = vld [vmem:[#allocation7 + $0x48] sm:$0xff]
    %v188 = vld [vmem:[#allocation7 + $0x50] sm:$0xff]
    %v189 = vld [vmem:[#allocation7 + $0x58] sm:$0xff]
    %v190 = vld [vmem:[#allocation7 + $0x60] sm:$0xff]
    %v191 = vld [vmem:[#allocation7 + $0x68] sm:$0xff]
    %v192 = vld [vmem:[#allocation7 + $0x70] sm:$0xff]
    %v193 = vld [vmem:[#allocation7 + $0x78] sm:$0xff]
    %v194 = vld [vmem:[#allocation7 + $0x80] sm:$0xff]
    %v195 = vld [vmem:[#allocation7 + $0x88] sm:$0xff]
    %v196 = vld [vmem:[#allocation7 + $0x90] sm:$0xff]
    %v197 = vld [vmem:[#allocation7 + $0x98] sm:$0xff]
    %v198 = vld [vmem:[#allocation7 + $0xa0] sm:$0xff]
    %v199 = vld [vmem:[#allocation7 + $0xa8] sm:$0xff]
    %v200 = vld [vmem:[#allocation7 + $0xb0] sm:$0xff]
    %v201 = vld [vmem:[#allocation7 + $0xb8] sm:$0xff]
    %v202 = vld [vmem:[#allocation7 + $0xc0] sm:$0xff]
    %v203 = vld [vmem:[#allocation7 + $0xc8] sm:$0xff]
    %v204 = vld [vmem:[#allocation7 + $0xd0] sm:$0xff]
    %v205 = vld [vmem:[#allocation7 + $0xd8] sm:$0xff]
    %v206 = vld [vmem:[#allocation7 + $0xe0] sm:$0xff]
    %v207 = vld [vmem:[#allocation7 + $0xe8] sm:$0xff]
    %v208 = vld [vmem:[#allocation7 + $0xf0] sm:$0xff]
    %v209 = vld [vmem:[#allocation7 + $0xf8] sm:$0xff]
    %v210 = vld [vmem:[#allocation7 + $0x100] sm:$0xff]
    %v211 = vld [vmem:[#allocation7 + $0x108] sm:$0xff]
    %v212 = vld [vmem:[#allocation7 + $0x110] sm:$0xff]
    %v213 = vld [vmem:[#allocation7 + $0x118] sm:$0xff]
    %v214 = vld [vmem:[#allocation7 + $0x120] sm:$0xff]
    %v215 = vld [vmem:[#allocation7 + $0x128] sm:$0xff]
    %v216 = vld [vmem:[#allocation7 + $0x130] sm:$0xff]
    %v217 = vld [vmem:[#allocation7 + $0x138] sm:$0xff]
    %v218 = vld [vmem:[#allocation7 + $0x140] sm:$0xff]
    %v219 = vld [vmem:[#allocation7 + $0x148] sm:$0xff]
    %v220 = vld [vmem:[#allocation7 + $0x150] sm:$0xff]
    %v221 = vld [vmem:[#allocation7 + $0x158] sm:$0xff]
    %v222 = vld [vmem:[#allocation7 + $0x160] sm:$0xff]
    %v223 = vld [vmem:[#allocation7 + $0x168] sm:$0xff]
    %v224 = vld [vmem:[#allocation7 + $0x170] sm:$0xff]
    %v225 = vld [vmem:[#allocation7 + $0x178] sm:$0xff]
    %v226 = vld [vmem:[#allocation7 + $0x180] sm:$0xff]
    %v227 = vld [vmem:[#allocation7 + $0x188] sm:$0xff]
    %v228 = vld [vmem:[#allocation7 + $0x190] sm:$0xff]
    %v229 = vld [vmem:[#allocation7 + $0x198] sm:$0xff]
    %v230 = vld [vmem:[#allocation7 + $0x1a0] sm:$0xff]
    %v231 = vld [vmem:[#allocation7 + $0x1a8] sm:$0xff]
    %v232 = vld [vmem:[#allocation7 + $0x1b0] sm:$0xff]
    %v233 = vld [vmem:[#allocation7 + $0x1b8] sm:$0xff]
    %v234 = vld [vmem:[#allocation7 + $0x1c0] sm:$0xff]
    %v235 = vld [vmem:[#allocation7 + $0x1c8] sm:$0xff]
    %v236 = vld [vmem:[#allocation7 + $0x1d0] sm:$0xff]
    %v237 = vld [vmem:[#allocation7 + $0x1d8] sm:$0xff]
    %v238 = vld [vmem:[#allocation7 + $0x1e0] sm:$0xff]
    %v239 = vld [vmem:[#allocation7 + $0x1e8] sm:$0xff]
    %v240 = vld [vmem:[#allocation7 + $0x1f0] sm:$0xff]
    %v241 = vld [vmem:[#allocation7 + $0x1f8] sm:$0xff]
    %v242 = vld [vmem:[%s4] sm:$0x3]
    %v244 = vlaneseq
    %v245 = vshrl.u32 %v244, 7
    %v246 = vsub.s32 0, %v245
    %v247 = vrot.slane %v242, %v246
    %v248 = vlaneseq
    %v249 = vshrl.u32 %v248, 7
    %v250 = vsub.s32 1, %v249
    %v251 = vrot.slane %v242, %v250
    %254 = vmatprep.subr.mxu0 %v179
    %255 = vmatpush1.msra.mxu0 %v178
    %256 = vmatprep.subr.mxu0 %v181
    %257 = vmatpush1.msra.mxu0 %v180
    %258 = vmatprep.subr.mxu0 %v183
    %259 = vmatpush1.msra.mxu0 %v182
    %260 = vmatprep.subr.mxu0 %v185
    %261 = vmatpush1.msra.mxu0 %v184
    %262 = vmatprep.subr.mxu0 %v187
    %263 = vmatpush1.msra.mxu0 %v186
    %264 = vmatprep.subr.mxu0 %v189
    %265 = vmatpush1.msra.mxu0 %v188
    %266 = vmatprep.subr.mxu0 %v191
    %267 = vmatpush1.msra.mxu0 %v190
    %268 = vmatprep.subr.mxu0 %v193
    %269 = vmatpush1.msra.mxu0 %v192
    %270 = vmatprep.subr.mxu0 %v195
    %271 = vmatpush1.msra.mxu0 %v194
    %272 = vmatprep.subr.mxu0 %v197
    %273 = vmatpush1.msra.mxu0 %v196
    %274 = vmatprep.subr.mxu0 %v199
    %275 = vmatpush1.msra.mxu0 %v198
    %276 = vmatprep.subr.mxu0 %v201
    %277 = vmatpush1.msra.mxu0 %v200
    %278 = vmatprep.subr.mxu0 %v203
    %279 = vmatpush1.msra.mxu0 %v202
    %280 = vmatprep.subr.mxu0 %v205
    %281 = vmatpush1.msra.mxu0 %v204
    %282 = vmatprep.subr.mxu0 %v207
    %283 = vmatpush1.msra.mxu0 %v206
    %284 = vmatprep.subr.mxu0 %v209
    %285 = vmatpush1.msra.mxu0 %v208
    %286 = vmatprep.subr.mxu0 %v211
    %287 = vmatpush1.msra.mxu0 %v210
    %288 = vmatprep.subr.mxu0 %v213
    %289 = vmatpush1.msra.mxu0 %v212
    %290 = vmatprep.subr.mxu0 %v215
    %291 = vmatpush1.msra.mxu0 %v214
    %292 = vmatprep.subr.mxu0 %v217
    %293 = vmatpush1.msra.mxu0 %v216
    %294 = vmatprep.subr.mxu0 %v219
    %295 = vmatpush1.msra.mxu0 %v218
    %296 = vmatprep.subr.mxu0 %v221
    %297 = vmatpush1.msra.mxu0 %v220
    %298 = vmatprep.subr.mxu0 %v223
    %299 = vmatpush1.msra.mxu0 %v222
    %300 = vmatprep.subr.mxu0 %v225
    %301 = vmatpush1.msra.mxu0 %v224
    %302 = vmatprep.subr.mxu0 %v227
    %303 = vmatpush1.msra.mxu0 %v226
    %304 = vmatprep.subr.mxu0 %v229
    %305 = vmatpush1.msra.mxu0 %v228
    %306 = vmatprep.subr.mxu0 %v231
    %307 = vmatpush1.msra.mxu0 %v230
    %308 = vmatprep.subr.mxu0 %v233
    %309 = vmatpush1.msra.mxu0 %v232
    %310 = vmatprep.subr.mxu0 %v235
    %311 = vmatpush1.msra.mxu0 %v234
    %312 = vmatprep.subr.mxu0 %v237
    %313 = vmatpush1.msra.mxu0 %v236
    %314 = vmatprep.subr.mxu0 %v239
    %315 = vmatpush1.msra.mxu0 %v238
    %316 = vmatprep.subr.mxu0 %v241
    %317 = vmatpush1.msra.mxu0 %v240
    %318 = vmatprep.mubr.f32.mxu0 %v177
    %319 = vmatmul.mubr.f32.gmra.mrb[0].mxu0 %v176
    %v320 = vpop.f32.mrb[0].mxu0
    %v321 = vadd.f32 %v247, %v320
    %v322 = vpop.f32.mrb[0].mxu0
    %v323 = vadd.f32 %v251, %v322
    %324 = vdwg.mxu0
    %v325 = vmax.f32 %v321, 0.0
    %v326 = vmax.f32 %v323, 0.0
    %v329 = vcombine.low %v325, %v326
    %v331 = vunpack.c.l.s4 1966171168
    %v332 = vunpack.c.0.s8 %v331
    %v333 = vlaneseq
    %v334 = vshrl.u32 %v333, 7
    %v335 = vsub.s32 %v332, %v334
    %v336 = vrot.slane %v329, %v335
    %v338 = vunpack.c.l.s4 1966171168
    %v339 = vunpack.c.0.s8 %v338
    %v340 = vlaneseq
    %v341 = vshrl.u32 %v340, 7
    %v342 = vsub.s32 %v339, %v341
    %v343 = vrot.slane %v336, %v342
    %v345 = vlaneseq
    %vm346 = vcmp.ge.s32.totalorder %v345, 0
    %vm347 = vcmp.lt.s32.totalorder %v345, 256
    %vm348 = vmand %vm346, %vm347
    %349 = vst.msk [vmem:[#allocation8] sm:$0x3] %vm348, %v343
    // Predicated region
    $region34: #{tpu_custom_call.1} parent=1 // pred_check
      _
    $region35: #{tpu_custom_call.1} parent=1 // pred_check_branch
      %351 = sbr.rel (0) target = $region37
    $region36: #{tpu_custom_call.1} parent=1 // pred_region
      %s353 = ssub.s32 32, 32
      %354 = vsyncadd [#allocation4], %s353
      %s356 = sshll.u32 [#allocation8], 4
      %s357 = int_to_ptr.vmem [resolvable:$true] %s356
      %359 = dma.vmem_to_hbm [thread:$0]  %s357, 32, %s5, [#allocation4]
    $region37: #{tpu_custom_call.1} parent=1 // pred_fallthru
      _
    // Predicated region
    $region38: #{tpu_custom_call.1} parent=1 // pred_check
      _
    $region39: #{tpu_custom_call.1} parent=1 // pred_check_branch
      %361 = sbr.rel (0) target = $region41
    $region40: #{tpu_custom_call.1} parent=1 // pred_region
      %362 = dma.done [#allocation4], 32
    $region41: #{tpu_custom_call.1} parent=1 // pred_fallthru
      _
    %363 = vsyncpa [#allocation3], 1
    %364 = vsyncpa [#allocation6], 1
    %365 = vsyncpa [#allocation4], 1

</llo_original>
